<compile_context>
chip_gen: v6e
topology: v6e:2x2x1
jax: 0.10.0
libtpu: 0.0.40
codegen_flags: <defaults>
</compile_context>

<pallas_src>
import functools

import jax
import jax.numpy as jnp
from jax.experimental import pallas as pl
from jax.experimental.pallas import tpu as pltpu


# ------------------------------ helpers ----------------------------------- #

def _round_up(x, m):
    return ((x + m - 1) // m) * m


def _pad2d(a, rows, cols):
    return jnp.pad(a, ((0, rows - a.shape[0]), (0, cols - a.shape[1])))


# ----------------------------- Pallas kernel ------------------------------ #

def _sage_layer_kernel(adj_ref, invdeg_ref, xsrc_ref, xtgt_ref, wl_ref, bl_ref,
                       wr_ref, o_ref, acc_ref, *, normalize, relu):
    k = pl.program_id(1)

    @pl.when(k == 0)
    def _init():
        acc_ref[...] = jnp.zeros_like(acc_ref)

    # sum over this N_src chunk of count(v, j) * x_src[j]   (MXU, bf16 -> f32)
    acc_ref[...] += jnp.dot(adj_ref[...], xsrc_ref[...],
                            preferred_element_type=jnp.float32)

    @pl.when(k == pl.num_programs(1) - 1)
    def _finalize():
        # mean = (1/deg) * sum, applied once in f32 after the accumulation.
        agg = acc_ref[...] * invdeg_ref[...]
        # lin_l(agg) + bias   (weights pre-transposed to [C_in, C_out])
        out = jnp.dot(agg.astype(wl_ref.dtype), wl_ref[...],
                      preferred_element_type=jnp.float32) + bl_ref[...]
        # + lin_r(x_target)   (root weight, no bias)
        out = out + jnp.dot(xtgt_ref[...], wr_ref[...],
                            preferred_element_type=jnp.float32)
        if normalize:
            # F.normalize(out, p=2, dim=-1); 1e-24 on sumsq == torch's 1e-12 on norm.
            sumsq = jnp.sum(out * out, axis=-1, keepdims=True)
            out = out * jax.lax.rsqrt(jnp.maximum(sumsq, 1e-24))
        if relu:
            out = jnp.maximum(out, 0.0)
        # TODO(synk): dropout(p=0.25) is training-only; eval forward -> identity.
        o_ref[...] = out.astype(o_ref.dtype)


def sage_layer(adj_counts, inv_deg, x_src, x_tgt, w_l, b_l, w_r, *,
               normalize, relu, tm_max=256, tk_max=512):
    n_tgt, n_src = adj_counts.shape
    c_in = x_src.shape[1]
    c_out = w_l.shape[0]

    # Pad lane dims to 128, sublane/node dims to tile multiples.
    c_in_p = _round_up(c_in, 128)
    c_out_p = _round_up(c_out, 128)
    tm = min(tm_max, _round_up(n_tgt, 8))
    tk = min(tk_max, _round_up(n_src, 128))
    n_tgt_p = _round_up(n_tgt, tm)
    n_src_p = _round_up(n_src, tk)

    # Host-side layout prep: pad, pre-transpose weights, cast MXU operands bf16.
    adj_p = _pad2d(adj_counts, n_tgt_p, n_src_p).astype(jnp.bfloat16)
    invd_p = jnp.pad(inv_deg, ((0, n_tgt_p - n_tgt), (0, 0)))          # f32
    xs_p = _pad2d(x_src, n_src_p, c_in_p).astype(jnp.bfloat16)
    xt_p = _pad2d(x_tgt, n_tgt_p, c_in_p).astype(jnp.bfloat16)
    wl_p = _pad2d(w_l.T, c_in_p, c_out_p).astype(jnp.bfloat16)         # [C_in, C_out]
    wr_p = _pad2d(w_r.T, c_in_p, c_out_p).astype(jnp.bfloat16)
    bl_p = jnp.pad(b_l, (0, c_out_p - c_out)).reshape(1, c_out_p)      # f32

    grid = (n_tgt_p // tm, n_src_p // tk)
    kernel = functools.partial(_sage_layer_kernel,
                               normalize=normalize, relu=relu)

    out_p = pl.pallas_call(
        kernel,
        out_shape=jax.ShapeDtypeStruct((n_tgt_p, c_out_p), jnp.float32),
        grid=grid,
        in_specs=[
            pl.BlockSpec((tm, tk), lambda i, k: (i, k)),           # adjacency tile
            pl.BlockSpec((tm, 1), lambda i, k: (i, 0)),            # 1/deg
            pl.BlockSpec((tk, c_in_p), lambda i, k: (k, 0)),       # x_src chunk
            pl.BlockSpec((tm, c_in_p), lambda i, k: (i, 0)),       # x_tgt tile
            pl.BlockSpec((c_in_p, c_out_p), lambda i, k: (0, 0)),  # W_l^T
            pl.BlockSpec((1, c_out_p), lambda i, k: (0, 0)),       # b_l
            pl.BlockSpec((c_in_p, c_out_p), lambda i, k: (0, 0)),  # W_r^T
        ],
        out_specs=pl.BlockSpec((tm, c_out_p), lambda i, k: (i, 0)),
        scratch_shapes=[pltpu.VMEM((tm, c_in_p), jnp.float32)],    # agg accumulator
        compiler_params=pltpu.CompilerParams(
            dimension_semantics=("parallel", "arbitrary"),
            vmem_limit_bytes=32 * 1024 * 1024),
    )(adj_p, invd_p, xs_p, xt_p, wl_p, bl_p, wr_p)

    return out_p[:n_tgt, :c_out]


# ------------------------------- glue / model ----------------------------- #

def build_adj_counts(edge_index, n_src, n_tgt):
    """edge_index: int32 [2, E], row 0 = source j, row 1 = target i.

    Returns unnormalized edge counts (exact in bf16) and 1/deg in f32 so the
    mean scaling can be applied in f32 after the MXU accumulation.
    """
    src, tgt = edge_index[0], edge_index[1]
    adj = jnp.zeros((n_tgt, n_src), jnp.float32).at[tgt, src].add(1.0)
    deg = jnp.sum(adj, axis=1, keepdims=True)
    inv_deg = 1.0 / jnp.maximum(deg, 1.0)   # zero-degree targets -> zero agg
    return adj, inv_deg


def init_sage_params(key, in_channels, hidden_channels, output_channels,
                     num_layers):
    params = []
    for i in range(num_layers):
        c_in = in_channels if i == 0 else hidden_channels
        c_out = hidden_channels if i < num_layers - 1 else output_channels
        key, k1, k2, k3 = jax.random.split(key, 4)
        scale = 1.0 / jnp.sqrt(jnp.float32(c_in))
        w_l = jax.random.uniform(k1, (c_out, c_in), jnp.float32, -scale, scale)
        b_l = jax.random.uniform(k2, (c_out,), jnp.float32, -scale, scale)
        w_r = jax.random.uniform(k3, (c_out, c_in), jnp.float32, -scale, scale)
        params.append((w_l, b_l, w_r))
    return params


def sage_forward(params, x, adjs):
    """adjs: list of (edge_index, size=(n_src, n_tgt)), one per layer."""
    num_layers = len(params)
    for i, ((edge_index, size), (w_l, b_l, w_r)) in enumerate(zip(adjs, params)):
        n_src, n_tgt = size
        x_src = x[:n_src]
        x_tgt = x[:n_tgt]
        adj, inv_deg = build_adj_counts(edge_index, n_src, n_tgt)
        not_last = i != num_layers - 1
        x = sage_layer(adj, inv_deg, x_src, x_tgt, w_l, b_l, w_r,
                       normalize=not_last, relu=not_last)
    return x


# ---------------------------------- main ----------------------------------- #

if __name__ == "__main__":
    key = jax.random.PRNGKey(0)

    in_channels, hidden_channels, output_channels, num_layers = 16, 32, 8, 2

    # Neighbor-sampled bipartite adjs (as produced by NeighborSampler):
    #   layer 0: 12 source nodes -> 8 target nodes
    #   layer 1:  8 source nodes -> 4 target nodes
    n0_src, n0_tgt = 12, 8
    n1_src, n1_tgt = 8, 4

    key, kx, ke0, ke1, kp = jax.random.split(key, 5)
    x = jax.random.normal(kx, (n0_src, in_channels), jnp.float32)

    e0 = 24
    src0 = jax.random.randint(ke0, (e0,), 0, n0_src, jnp.int32)
    tgt0 = jax.random.randint(jax.random.fold_in(ke0, 1), (e0,), 0, n0_tgt, jnp.int32)
    edge_index0 = jnp.stack([src0, tgt0])

    e1 = 12
    src1 = jax.random.randint(ke1, (e1,), 0, n1_src, jnp.int32)
    tgt1 = jax.random.randint(jax.random.fold_in(ke1, 1), (e1,), 0, n1_tgt, jnp.int32)
    edge_index1 = jnp.stack([src1, tgt1])

    adjs = [(edge_index0, (n0_src, n0_tgt)),
            (edge_index1, (n1_src, n1_tgt))]

    params = init_sage_params(kp, in_channels, hidden_channels,
                              output_channels, num_layers)

    out = sage_forward(params, x, adjs)
    out = jax.block_until_ready(out)
    assert out.shape == (n1_tgt, output_channels), out.shape
    assert bool(jnp.all(jnp.isfinite(out)))
    print("KERNEL_OK")
</pallas_src>

<mosaic_0001>
module attributes {stable_mosaic.version = 11 : i64} {
  func.func @_sage_layer_kernel(%arg0: i32, %arg1: i32, %arg2: memref<8x128xbf16, #tpu.memory_space<vmem>>, %arg3: memref<8x1xf32, #tpu.memory_space<vmem>>, %arg4: memref<128x128xbf16, #tpu.memory_space<vmem>>, %arg5: memref<8x128xbf16, #tpu.memory_space<vmem>>, %arg6: memref<128x128xbf16, #tpu.memory_space<vmem>>, %arg7: memref<1x128xf32, #tpu.memory_space<vmem>>, %arg8: memref<128x128xbf16, #tpu.memory_space<vmem>>, %arg9: memref<8x128xf32, #tpu.memory_space<vmem>>, %arg10: memref<8x128xf32, #tpu.memory_space<vmem>>) attributes {dimension_semantics = [#tpu.dimension_semantics<parallel>, #tpu.dimension_semantics<arbitrary>], iteration_bounds = array<i64: 1, 1>, scalar_prefetch = 0 : i64, scratch_operands = 1 : i64, tpu.core_type = #tpu.core_type<tc>, window_params = [{transform_indices = @transform_0, window_bounds = array<i64: 8, 128>}, {transform_indices = @transform_1, window_bounds = array<i64: 8, 1>}, {transform_indices = @transform_2, window_bounds = array<i64: 128, 128>}, {transform_indices = @transform_3, window_bounds = array<i64: 8, 128>}, {pipeline_mode = #tpu.pipeline_mode<synchronous>, transform_indices = @transform_4, window_bounds = array<i64: 128, 128>}, {pipeline_mode = #tpu.pipeline_mode<synchronous>, transform_indices = @transform_5, window_bounds = array<i64: 1, 128>}, {pipeline_mode = #tpu.pipeline_mode<synchronous>, transform_indices = @transform_6, window_bounds = array<i64: 128, 128>}, {transform_indices = @transform_7, window_bounds = array<i64: 8, 128>}]} {
    %c0_i32 = arith.constant 0 : i32
    %0 = arith.cmpi eq, %arg1, %c0_i32 : i32
    %1 = arith.extui %0 : i1 to i32
    %c0_i32_0 = arith.constant 0 : i32
    %2 = arith.cmpi ne, %1, %c0_i32_0 : i32
    scf.if %2 {
      %cst_10 = arith.constant 0.000000e+00 : f32
      %12 = vector.broadcast %cst_10 : f32 to vector<8x128xf32>
      %c0_11 = arith.constant 0 : index
      %c0_12 = arith.constant 0 : index
      %13 = vector.load %arg10[%c0_11, %c0_12] : memref<8x128xf32, #tpu.memory_space<vmem>>, vector<8x128xf32>
      tpu.vector_store %arg10[%c0_11, %c0_12], %12 {strides = array<i32>} : memref<8x128xf32, #tpu.memory_space<vmem>>, vector<8x128xf32>,
    } else {
    }
    %c0 = arith.constant 0 : index
    %c0_1 = arith.constant 0 : index
    %3 = vector.load %arg10[%c0, %c0_1] : memref<8x128xf32, #tpu.memory_space<vmem>>, vector<8x128xf32>
    %c0_2 = arith.constant 0 : index
    %c0_3 = arith.constant 0 : index
    %4 = vector.load %arg2[%c0_2, %c0_3] : memref<8x128xbf16, #tpu.memory_space<vmem>>, vector<8x128xbf16>
    %c0_4 = arith.constant 0 : index
    %c0_5 = arith.constant 0 : index
    %5 = vector.load %arg4[%c0_4, %c0_5] : memref<128x128xbf16, #tpu.memory_space<vmem>>, vector<128x128xbf16>
    %cst = arith.constant dense<0.000000e+00> : vector<8x128xf32>
    %6 = tpu.matmul %4, %5, %cst {dimension_numbers = #tpu.dot_dimension_numbers<[1], [0], [0], [1], [0, 0, 1, 1], [], []>} : vector<8x128xbf16>, vector<128x128xbf16>, vector<8x128xf32> -> vector<8x128xf32>
    %7 = arith.addf %3, %6 : vector<8x128xf32>
    %c0_6 = arith.constant 0 : index
    %c0_7 = arith.constant 0 : index
    %8 = vector.load %arg10[%c0_6, %c0_7] : memref<8x128xf32, #tpu.memory_space<vmem>>, vector<8x128xf32>
    tpu.vector_store %arg10[%c0_6, %c0_7], %7 {strides = array<i32>} : memref<8x128xf32, #tpu.memory_space<vmem>>, vector<8x128xf32>,
    %c0_i32_8 = arith.constant 0 : i32
    %9 = arith.cmpi eq, %arg1, %c0_i32_8 : i32
    %10 = arith.extui %9 : i1 to i32
    %c0_i32_9 = arith.constant 0 : i32
    %11 = arith.cmpi ne, %10, %c0_i32_9 : i32
    scf.if %11 {
      %c0_10 = arith.constant 0 : index
      %c0_11 = arith.constant 0 : index
      %12 = vector.load %arg10[%c0_10, %c0_11] : memref<8x128xf32, #tpu.memory_space<vmem>>, vector<8x128xf32>
      %c0_12 = arith.constant 0 : index
      %c0_13 = arith.constant 0 : index
      %13 = vector.load %arg3[%c0_12, %c0_13] : memref<8x1xf32, #tpu.memory_space<vmem>>, vector<8x1xf32>
      %14 = vector.broadcast %13 : vector<8x1xf32> to vector<8x128xf32>
      %15 = arith.mulf %12, %14 : vector<8x128xf32>
      %16 = arith.truncf %15 : vector<8x128xf32> to vector<8x128xbf16>
      %c0_14 = arith.constant 0 : index
      %c0_15 = arith.constant 0 : index
      %17 = vector.load %arg6[%c0_14, %c0_15] : memref<128x128xbf16, #tpu.memory_space<vmem>>, vector<128x128xbf16>
      %cst_16 = arith.constant dense<0.000000e+00> : vector<8x128xf32>
      %18 = tpu.matmul %16, %17, %cst_16 {dimension_numbers = #tpu.dot_dimension_numbers<[1], [0], [0], [1], [0, 0, 1, 1], [], []>} : vector<8x128xbf16>, vector<128x128xbf16>, vector<8x128xf32> -> vector<8x128xf32>
      %c0_17 = arith.constant 0 : index
      %c0_18 = arith.constant 0 : index
      %19 = vector.load %arg7[%c0_17, %c0_18] : memref<1x128xf32, #tpu.memory_space<vmem>>, vector<1x128xf32>
      %20 = vector.broadcast %19 : vector<1x128xf32> to vector<8x128xf32>
      %21 = arith.addf %18, %20 : vector<8x128xf32>
      %c0_19 = arith.constant 0 : index
      %c0_20 = arith.constant 0 : index
      %22 = vector.load %arg5[%c0_19, %c0_20] : memref<8x128xbf16, #tpu.memory_space<vmem>>, vector<8x128xbf16>
      %c0_21 = arith.constant 0 : index
      %c0_22 = arith.constant 0 : index
      %23 = vector.load %arg8[%c0_21, %c0_22] : memref<128x128xbf16, #tpu.memory_space<vmem>>, vector<128x128xbf16>
      %cst_23 = arith.constant dense<0.000000e+00> : vector<8x128xf32>
      %24 = tpu.matmul %22, %23, %cst_23 {dimension_numbers = #tpu.dot_dimension_numbers<[1], [0], [0], [1], [0, 0, 1, 1], [], []>} : vector<8x128xbf16>, vector<128x128xbf16>, vector<8x128xf32> -> vector<8x128xf32>
      %25 = arith.addf %21, %24 : vector<8x128xf32>
      %26 = arith.mulf %25, %25 : vector<8x128xf32>
      %cst_24 = arith.constant dense<0.000000e+00> : vector<8xf32>
      %27 = vector.multi_reduction <add>, %26, %cst_24 [1] : vector<8x128xf32> to vector<8xf32>
      %28 = vector.shape_cast %27 : vector<8xf32> to vector<8x1xf32>
      %cst_25 = arith.constant 1.000000e-24 : f32
      %29 = vector.broadcast %cst_25 : f32 to vector<8x1xf32>
      %30 = arith.maximumf %28, %29 : vector<8x1xf32>
      %31 = math.rsqrt %30 : vector<8x1xf32>
      %32 = vector.broadcast %31 : vector<8x1xf32> to vector<8x128xf32>
      %33 = arith.mulf %25, %32 : vector<8x128xf32>
      %cst_26 = arith.constant 0.000000e+00 : f32
      %34 = vector.broadcast %cst_26 : f32 to vector<8x128xf32>
      %35 = arith.maximumf %33, %34 : vector<8x128xf32>
      %c0_27 = arith.constant 0 : index
      %c0_28 = arith.constant 0 : index
      %36 = vector.load %arg9[%c0_27, %c0_28] : memref<8x128xf32, #tpu.memory_space<vmem>>, vector<8x128xf32>
      tpu.vector_store %arg9[%c0_27, %c0_28], %35 {strides = array<i32>} : memref<8x128xf32, #tpu.memory_space<vmem>>, vector<8x128xf32>,
    } else {
    }
    return
  }
  func.func @transform_0(%arg0: i32, %arg1: i32) -> (i32, i32) {
    %c0_i32 = arith.constant 0 : i32
    return %arg0, %arg1 : i32, i32
  }
  func.func @transform_1(%arg0: i32, %arg1: i32) -> (i32, i32) {
    %c0_i32 = arith.constant 0 : i32
    %c0_i32_0 = arith.constant 0 : i32
    return %arg0, %c0_i32 : i32, i32
  }
  func.func @transform_2(%arg0: i32, %arg1: i32) -> (i32, i32) {
    %c0_i32 = arith.constant 0 : i32
    %c0_i32_0 = arith.constant 0 : i32
    return %arg1, %c0_i32 : i32, i32
  }
  func.func @transform_3(%arg0: i32, %arg1: i32) -> (i32, i32) {
    %c0_i32 = arith.constant 0 : i32
    %c0_i32_0 = arith.constant 0 : i32
    return %arg0, %c0_i32 : i32, i32
  }
  func.func @transform_4(%arg0: i32, %arg1: i32) -> (i32, i32) {
    %c0_i32 = arith.constant 0 : i32
    %c0_i32_0 = arith.constant 0 : i32
    %c0_i32_1 = arith.constant 0 : i32
    return %c0_i32, %c0_i32_0 : i32, i32
  }
  func.func @transform_5(%arg0: i32, %arg1: i32) -> (i32, i32) {
    %c0_i32 = arith.constant 0 : i32
    %c0_i32_0 = arith.constant 0 : i32
    %c0_i32_1 = arith.constant 0 : i32
    return %c0_i32, %c0_i32_0 : i32, i32
  }
  func.func @transform_6(%arg0: i32, %arg1: i32) -> (i32, i32) {
    %c0_i32 = arith.constant 0 : i32
    %c0_i32_0 = arith.constant 0 : i32
    %c0_i32_1 = arith.constant 0 : i32
    return %c0_i32, %c0_i32_0 : i32, i32
  }
  func.func @transform_7(%arg0: i32, %arg1: i32) -> (i32, i32) {
    %c0_i32 = arith.constant 0 : i32
    %c0_i32_0 = arith.constant 0 : i32
    return %arg0, %c0_i32 : i32, i32
  }
}

</mosaic_0001>

<llo_original>
// kernel: tpu_custom_call.1
$region0: #{tpu_custom_call.1}
  #allocation0 [shape = 'u32[]', space=smem, size = 0x4, offset = 0x4, fixed_abs, tag = 'smem constant byte address 0x4 - core index']
  #allocation1 [shape = 'u32[144,128]{1,0:T(1,128)}', space=vmem, size = 0x12000, scoped, tag = 'internal scratch']
  #allocation2 [shape = 'f32[8,128]{1,0:T(8,128)}', space=vmem, size = 0x1000, scoped, tag = 'scratch operand']
  %s0 = inlined_call_operand.vmem [shape: bf16[8,128], index: 0, kind: input, shape index: {}]
  %s1 = inlined_call_operand.vmem [shape: f32[8,1], index: 1, kind: input, shape index: {}]
  %s2 = inlined_call_operand.hbm [shape: bf16[128,128], index: 2, kind: input, shape index: {}]
  %s3 = inlined_call_operand.vmem [shape: bf16[8,128], index: 3, kind: input, shape index: {}]
  %s4 = inlined_call_operand.hbm [shape: bf16[128,128], index: 4, kind: input, shape index: {}]
  %s5 = inlined_call_operand.vmem [shape: f32[1,128], index: 5, kind: input, shape index: {}]
  %s6 = inlined_call_operand.hbm [shape: bf16[128,128], index: 6, kind: input, shape index: {}]
  %s7 = inlined_call_operand.hbm [shape: f32[8,128], index: 7, kind: output, shape index: {}]
  %s8 = sld [smem:[#allocation0]]
  $region58: #{tpu_custom_call.1} parent=0
    _
  %s10 = ssub.s32 1, %s8
  %s11 = scalar_select 0, %s10, %s8
  $region1: #{tpu_custom_call.1} parent=0
    #allocation3 [shape = 'u8[32768]{0}', space=vmem, size = 0x8000, scoped, tag = 'input window, operand 2, single buffered']
    #allocation4 [shape = 's32[1]{0}', space=sflag, size = 0x4, scoped, tag = 'scoped memory for tpu_custom_call.1']
    #allocation5 [shape = 's32[1]{0}', space=sflag, size = 0x4, scoped, tag = 'scoped memory for tpu_custom_call.1']
    #allocation6 [shape = 'u8[32768]{0}', space=vmem, size = 0x8000, scoped, tag = 'input window, operand 4, single buffered']
    #allocation7 [shape = 's32[1]{0}', space=sflag, size = 0x4, scoped, tag = 'scoped memory for tpu_custom_call.1']
    #allocation8 [shape = 'u8[32768]{0}', space=vmem, size = 0x8000, scoped, tag = 'input window, operand 6, single buffered']
    #allocation9 [shape = 'u8[4096]{0}', space=vmem, size = 0x1000, scoped, tag = 'output window, operand 0, single buffered']
    %12 = vsyncpa [#allocation4], 0
    %13 = vsyncpa [#allocation7], 0
    %14 = vsyncpa [#allocation5], 0
    // Predicated region
    $region2: #{tpu_custom_call.1} parent=1 // pred_check
      _
    $region3: #{tpu_custom_call.1} parent=1 // pred_check_branch
      %16 = sbr.rel (0) target = $region5
    $region4: #{tpu_custom_call.1} parent=1 // pred_region
      _
    $region5: #{tpu_custom_call.1} parent=1 // pred_fallthru
      _
    // Predicated region
    $region6: #{tpu_custom_call.1} parent=1 // pred_check
      _
    $region7: #{tpu_custom_call.1} parent=1 // pred_check_branch
      %18 = sbr.rel (0) target = $region9
    $region8: #{tpu_custom_call.1} parent=1 // pred_region
      _
    $region9: #{tpu_custom_call.1} parent=1 // pred_fallthru
      _
    // Predicated region
    $region10: #{tpu_custom_call.1} parent=1 // pred_check
      _
    $region11: #{tpu_custom_call.1} parent=1 // pred_check_branch
      %20 = sbr.rel (0) target = $region13
    $region12: #{tpu_custom_call.1} parent=1 // pred_region
      %s22 = ssub.s32 1024, 1024
      %23 = vsyncadd [#allocation4], %s22
      %s24 = sshll.u32 [#allocation3], 4
      %s25 = int_to_ptr.vmem [resolvable:$true] %s24
      %30 = dma.hbm_to_vmem [thread:$0]  %s2, 1024, %s25, [#allocation4], 64, 64, 4
    $region13: #{tpu_custom_call.1} parent=1 // pred_fallthru
      _
    // Predicated region
    $region14: #{tpu_custom_call.1} parent=1 // pred_check
      _
    $region15: #{tpu_custom_call.1} parent=1 // pred_check_branch
      %32 = sbr.rel (0) target = $region17
    $region16: #{tpu_custom_call.1} parent=1 // pred_region
      _
    $region17: #{tpu_custom_call.1} parent=1 // pred_fallthru
      _
    // Predicated region
    $region18: #{tpu_custom_call.1} parent=1 // pred_check
      _
    $region19: #{tpu_custom_call.1} parent=1 // pred_check_branch
      %34 = sbr.rel (0) target = $region21
    $region20: #{tpu_custom_call.1} parent=1 // pred_region
      %s36 = ssub.s32 1024, 1024
      %37 = vsyncadd [#allocation7], %s36
      %s38 = sshll.u32 [#allocation6], 4
      %s39 = int_to_ptr.vmem [resolvable:$true] %s38
      %44 = dma.hbm_to_vmem [thread:$0]  %s4, 1024, %s39, [#allocation7], 64, 64, 4
    $region21: #{tpu_custom_call.1} parent=1 // pred_fallthru
      _
    // Predicated region
    $region22: #{tpu_custom_call.1} parent=1 // pred_check
      _
    $region23: #{tpu_custom_call.1} parent=1 // pred_check_branch
      %46 = sbr.rel (0) target = $region25
    $region24: #{tpu_custom_call.1} parent=1 // pred_region
      _
    $region25: #{tpu_custom_call.1} parent=1 // pred_fallthru
      _
    // Predicated region
    $region26: #{tpu_custom_call.1} parent=1 // pred_check
      _
    $region27: #{tpu_custom_call.1} parent=1 // pred_check_branch
      %48 = sbr.rel (0) target = $region29
    $region28: #{tpu_custom_call.1} parent=1 // pred_region
      %s50 = ssub.s32 1024, 1024
      %51 = vsyncadd [#allocation7], %s50
      %s52 = sshll.u32 [#allocation8], 4
      %s53 = int_to_ptr.vmem [resolvable:$true] %s52
      %58 = dma.hbm_to_vmem [thread:$0]  %s6, 1024, %s53, [#allocation7], 64, 64, 4
    $region29: #{tpu_custom_call.1} parent=1 // pred_fallthru
      _
    // Predicated region
    $region30: #{tpu_custom_call.1} parent=1 // pred_check
      _
    $region31: #{tpu_custom_call.1} parent=1 // pred_check_branch
      %60 = sbr.rel (0) target = $region33
    $region32: #{tpu_custom_call.1} parent=1 // pred_region
      %61 = dma.done [#allocation4], 1024
    $region33: #{tpu_custom_call.1} parent=1 // pred_fallthru
      _
    // Predicated region
    $region34: #{tpu_custom_call.1} parent=1 // pred_check
      _
    $region35: #{tpu_custom_call.1} parent=1 // pred_check_branch
      %63 = sbr.rel (0) target = $region37
    $region36: #{tpu_custom_call.1} parent=1 // pred_region
      %64 = dma.done [#allocation7], 1024
    $region37: #{tpu_custom_call.1} parent=1 // pred_fallthru
      _
    // Predicated region
    $region38: #{tpu_custom_call.1} parent=1 // pred_check
      _
    $region39: #{tpu_custom_call.1} parent=1 // pred_check_branch
      %66 = sbr.rel (0) target = $region41
    $region40: #{tpu_custom_call.1} parent=1 // pred_region
      %67 = dma.done [#allocation7], 1024
    $region41: #{tpu_custom_call.1} parent=1 // pred_fallthru
      _
    %p69 = scmp.eq.s32.totalorder 0, 0
    // Predicated region
    $region42: #{tpu_custom_call.1} parent=1 // pred_check
      %p70 = pneg %p69
    $region43: #{tpu_custom_call.1} parent=1 // pred_check_branch
      %72 = sbr.rel (%p70) target = $region45
    $region44: #{tpu_custom_call.1} parent=1 // pred_region
      %73 = vst [vmem:[#allocation2] sm:$0xff] 0.0
    $region45: #{tpu_custom_call.1} parent=1 // pred_fallthru
      _
    %v74 = vld [vmem:[#allocation2] sm:$0xff]
    %v75 = vld [vmem:[%s0] sm:$0xf]
    %v76 = vld [vmem:[#allocation3] sm:$0xf]
    %v77 = vld [vmem:[#allocation3 + $0x4] sm:$0xf]
    %v78 = vld [vmem:[#allocation3 + $0x8] sm:$0xf]
    %v79 = vld [vmem:[#allocation3 + $0xc] sm:$0xf]
    %v80 = vld [vmem:[#allocation3 + $0x10] sm:$0xf]
    %v81 = vld [vmem:[#allocation3 + $0x14] sm:$0xf]
    %v82 = vld [vmem:[#allocation3 + $0x18] sm:$0xf]
    %v83 = vld [vmem:[#allocation3 + $0x1c] sm:$0xf]
    %v84 = vld [vmem:[#allocation3 + $0x20] sm:$0xf]
    %v85 = vld [vmem:[#allocation3 + $0x24] sm:$0xf]
    %v86 = vld [vmem:[#allocation3 + $0x28] sm:$0xf]
    %v87 = vld [vmem:[#allocation3 + $0x2c] sm:$0xf]
    %v88 = vld [vmem:[#allocation3 + $0x30] sm:$0xf]
    %v89 = vld [vmem:[#allocation3 + $0x34] sm:$0xf]
    %v90 = vld [vmem:[#allocation3 + $0x38] sm:$0xf]
    %v91 = vld [vmem:[#allocation3 + $0x3c] sm:$0xf]
    %v108 = vunpack.c.l.b16 %v76
    %v109 = vunpack.c.l.b16 %v77
    %v110 = vunpack.c.l.b16 %v78
    %v111 = vunpack.c.l.b16 %v79
    %v112 = vunpack.c.l.b16 %v80
    %v113 = vunpack.c.l.b16 %v81
    %v114 = vunpack.c.l.b16 %v82
    %v115 = vunpack.c.l.b16 %v83
    %v116 = vunpack.c.l.b16 %v84
    %v117 = vunpack.c.l.b16 %v85
    %v118 = vunpack.c.l.b16 %v86
    %v119 = vunpack.c.l.b16 %v87
    %v120 = vunpack.c.l.b16 %v88
    %v121 = vunpack.c.l.b16 %v89
    %v122 = vunpack.c.l.b16 %v90
    %v123 = vunpack.c.l.b16 %v91
    %v124 = vpack.c.b16 %v109, %v108
    %v125 = vpack.c.b16 %v111, %v110
    %v126 = vpack.c.b16 %v113, %v112
    %v127 = vpack.c.b16 %v115, %v114
    %v128 = vpack.c.b16 %v117, %v116
    %v129 = vpack.c.b16 %v119, %v118
    %v130 = vpack.c.b16 %v121, %v120
    %v131 = vpack.c.b16 %v123, %v122
    %140 = vmatprep.subr.bf16.mxu0 0
    %141 = vmatpush1.bf16.msra.mxu0 %v131
    %142 = vmatprep.subr.bf16.mxu0 0
    %143 = vmatpush1.bf16.msra.mxu0 %v130
    %144 = vmatprep.subr.bf16.mxu0 0
    %145 = vmatpush1.bf16.msra.mxu0 %v129
    %146 = vmatprep.subr.bf16.mxu0 0
    %147 = vmatpush1.bf16.msra.mxu0 %v128
    %148 = vmatprep.subr.bf16.mxu0 0
    %149 = vmatpush1.bf16.msra.mxu0 %v127
    %150 = vmatprep.subr.bf16.mxu0 0
    %151 = vmatpush1.bf16.msra.mxu0 %v126
    %152 = vmatprep.subr.bf16.mxu0 0
    %153 = vmatpush1.bf16.msra.mxu0 %v125
    %154 = vmatprep.subr.bf16.mxu0 0
    %155 = vmatpush1.bf16.msra.mxu0 %v124
    %156 = vmatprep.subr.bf16.mxu0 0
    %157 = vmatpush2.bf16.msra.mxu0 0
    %158 = vmatprep.subr.bf16.mxu0 0
    %159 = vmatpush2.bf16.msra.mxu0 0
    %160 = vmatprep.subr.bf16.mxu0 0
    %161 = vmatpush2.bf16.msra.mxu0 0
    %162 = vmatprep.subr.bf16.mxu0 0
    %163 = vmatpush2.bf16.msra.mxu0 0
    %164 = vmatprep.subr.bf16.mxu0 0
    %165 = vmatpush2.bf16.msra.mxu0 0
    %166 = vmatprep.subr.bf16.mxu0 0
    %167 = vmatpush2.bf16.msra.mxu0 0
    %168 = vmatprep.subr.bf16.mxu0 0
    %169 = vmatpush2.bf16.msra.mxu0 0
    %170 = vmatprep.subr.bf16.mxu0 0
    %171 = vmatpush2.bf16.msra.mxu0 0
    %172 = vmatprep.mubr.bf16.mxu0 0
    %173 = vmatmul.mubr.bf16.gmra.mxu0 %v75
    %v174 = vpop.f32.mrf.mxu0
    %v175 = vadd.f32 0.0, %v174
    %v176 = vpop.f32.mrf.mxu0
    %v177 = vpop.f32.mrf.mxu0
    %v178 = vpop.f32.mrf.mxu0
    %179 = vdwg.mxu0
    %v180 = vadd.f32 %v74, %v175
    %181 = vst [vmem:[#allocation2] sm:$0xff] %v180
    // Predicated region
    $region46: #{tpu_custom_call.1} parent=1 // pred_check
      %p182 = pneg %p69
    $region47: #{tpu_custom_call.1} parent=1 // pred_check_branch
      %184 = sbr.rel (%p182) target = $region49
    $region48: #{tpu_custom_call.1} parent=1 // pred_region
      %v185 = vld [vmem:[#allocation2] sm:$0xff]
      %v186 = vld [vmem:[%s1] sm:$0xff]
      %188 = vset.pattern.permute.xlu0 0
      %189 = vperm.xlu0 %188, %v186
      %v190 = vpop.permute.xlu0 %189
      %v192 = vmul.f32 %v185, %v190
      %v193 = vpack.c.bf16 %v192, %v192
      %v194 = vld [vmem:[#allocation6] sm:$0xf]
      %v195 = vld [vmem:[#allocation6 + $0x4] sm:$0xf]
      %v196 = vld [vmem:[#allocation6 + $0x8] sm:$0xf]
      %v197 = vld [vmem:[#allocation6 + $0xc] sm:$0xf]
      %v198 = vld [vmem:[#allocation6 + $0x10] sm:$0xf]
      %v199 = vld [vmem:[#allocation6 + $0x14] sm:$0xf]
      %v200 = vld [vmem:[#allocation6 + $0x18] sm:$0xf]
      %v201 = vld [vmem:[#allocation6 + $0x1c] sm:$0xf]
      %v202 = vld [vmem:[#allocation6 + $0x20] sm:$0xf]
      %v203 = vld [vmem:[#allocation6 + $0x24] sm:$0xf]
      %v204 = vld [vmem:[#allocation6 + $0x28] sm:$0xf]
      %v205 = vld [vmem:[#allocation6 + $0x2c] sm:$0xf]
      %v206 = vld [vmem:[#allocation6 + $0x30] sm:$0xf]
      %v207 = vld [vmem:[#allocation6 + $0x34] sm:$0xf]
      %v208 = vld [vmem:[#allocation6 + $0x38] sm:$0xf]
      %v209 = vld [vmem:[#allocation6 + $0x3c] sm:$0xf]
      %v210 = vld [vmem:[%s5] sm:$0x1]
      %v212 = vlaneseq
      %v213 = vshrl.u32 %v212, 7
      %v214 = vsub.s32 0, %v213
      %v215 = vrot.slane %v210, %v214
      %v233 = vunpack.c.l.b16 %v194
      %v234 = vunpack.c.l.b16 %v195
      %v235 = vunpack.c.l.b16 %v196
      %v236 = vunpack.c.l.b16 %v197
      %v237 = vunpack.c.l.b16 %v198
      %v238 = vunpack.c.l.b16 %v199
      %v239 = vunpack.c.l.b16 %v200
      %v240 = vunpack.c.l.b16 %v201
      %v241 = vunpack.c.l.b16 %v202
      %v242 = vunpack.c.l.b16 %v203
      %v243 = vunpack.c.l.b16 %v204
      %v244 = vunpack.c.l.b16 %v205
      %v245 = vunpack.c.l.b16 %v206
      %v246 = vunpack.c.l.b16 %v207
      %v247 = vunpack.c.l.b16 %v208
      %v248 = vunpack.c.l.b16 %v209
      %v249 = vpack.c.b16 %v234, %v233
      %v250 = vpack.c.b16 %v236, %v235
      %v251 = vpack.c.b16 %v238, %v237
      %v252 = vpack.c.b16 %v240, %v239
      %v253 = vpack.c.b16 %v242, %v241
      %v254 = vpack.c.b16 %v244, %v243
      %v255 = vpack.c.b16 %v246, %v245
      %v256 = vpack.c.b16 %v248, %v247
      %265 = vmatprep.subr.bf16.mxu0 0
      %266 = vmatpush1.bf16.msra.mxu0 %v256
      %267 = vmatprep.subr.bf16.mxu0 0
      %268 = vmatpush1.bf16.msra.mxu0 %v255
      %269 = vmatprep.subr.bf16.mxu0 0
      %270 = vmatpush1.bf16.msra.mxu0 %v254
      %271 = vmatprep.subr.bf16.mxu0 0
      %272 = vmatpush1.bf16.msra.mxu0 %v253
      %273 = vmatprep.subr.bf16.mxu0 0
      %274 = vmatpush1.bf16.msra.mxu0 %v252
      %275 = vmatprep.subr.bf16.mxu0 0
      %276 = vmatpush1.bf16.msra.mxu0 %v251
      %277 = vmatprep.subr.bf16.mxu0 0
      %278 = vmatpush1.bf16.msra.mxu0 %v250
      %279 = vmatprep.subr.bf16.mxu0 0
      %280 = vmatpush1.bf16.msra.mxu0 %v249
      %281 = vmatprep.subr.bf16.mxu0 0
      %282 = vmatpush2.bf16.msra.mxu0 0
      %283 = vmatprep.subr.bf16.mxu0 0
      %284 = vmatpush2.bf16.msra.mxu0 0
      %285 = vmatprep.subr.bf16.mxu0 0
      %286 = vmatpush2.bf16.msra.mxu0 0
      %287 = vmatprep.subr.bf16.mxu0 0
      %288 = vmatpush2.bf16.msra.mxu0 0
      %289 = vmatprep.subr.bf16.mxu0 0
      %290 = vmatpush2.bf16.msra.mxu0 0
      %291 = vmatprep.subr.bf16.mxu0 0
      %292 = vmatpush2.bf16.msra.mxu0 0
      %293 = vmatprep.subr.bf16.mxu0 0
      %294 = vmatpush2.bf16.msra.mxu0 0
      %295 = vmatprep.subr.bf16.mxu0 0
      %296 = vmatpush2.bf16.msra.mxu0 0
      %297 = vmatprep.mubr.bf16.mxu0 0
      %298 = vmatmul.mubr.bf16.gmra.mxu0 %v193
      %v299 = vpop.f32.mrf.mxu0
      %v300 = vadd.f32 %v215, %v299
      %v301 = vpop.f32.mrf.mxu0
      %v302 = vpop.f32.mrf.mxu0
      %v303 = vpop.f32.mrf.mxu0
      %304 = vdwg.mxu0
      %v305 = vld [vmem:[%s3] sm:$0xf]
      %v306 = vld [vmem:[#allocation8] sm:$0xf]
      %v307 = vld [vmem:[#allocation8 + $0x4] sm:$0xf]
      %v308 = vld [vmem:[#allocation8 + $0x8] sm:$0xf]
      %v309 = vld [vmem:[#allocation8 + $0xc] sm:$0xf]
      %v310 = vld [vmem:[#allocation8 + $0x10] sm:$0xf]
      %v311 = vld [vmem:[#allocation8 + $0x14] sm:$0xf]
      %v312 = vld [vmem:[#allocation8 + $0x18] sm:$0xf]
      %v313 = vld [vmem:[#allocation8 + $0x1c] sm:$0xf]
      %v314 = vld [vmem:[#allocation8 + $0x20] sm:$0xf]
      %v315 = vld [vmem:[#allocation8 + $0x24] sm:$0xf]
      %v316 = vld [vmem:[#allocation8 + $0x28] sm:$0xf]
      %v317 = vld [vmem:[#allocation8 + $0x2c] sm:$0xf]
      %v318 = vld [vmem:[#allocation8 + $0x30] sm:$0xf]
      %v319 = vld [vmem:[#allocation8 + $0x34] sm:$0xf]
      %v320 = vld [vmem:[#allocation8 + $0x38] sm:$0xf]
      %v321 = vld [vmem:[#allocation8 + $0x3c] sm:$0xf]
      %v338 = vunpack.c.l.b16 %v306
      %v339 = vunpack.c.l.b16 %v307
      %v340 = vunpack.c.l.b16 %v308
      %v341 = vunpack.c.l.b16 %v309
      %v342 = vunpack.c.l.b16 %v310
      %v343 = vunpack.c.l.b16 %v311
      %v344 = vunpack.c.l.b16 %v312
      %v345 = vunpack.c.l.b16 %v313
      %v346 = vunpack.c.l.b16 %v314
      %v347 = vunpack.c.l.b16 %v315
      %v348 = vunpack.c.l.b16 %v316
      %v349 = vunpack.c.l.b16 %v317
      %v350 = vunpack.c.l.b16 %v318
      %v351 = vunpack.c.l.b16 %v319
      %v352 = vunpack.c.l.b16 %v320
      %v353 = vunpack.c.l.b16 %v321
      %v354 = vpack.c.b16 %v339, %v338
      %v355 = vpack.c.b16 %v341, %v340
      %v356 = vpack.c.b16 %v343, %v342
      %v357 = vpack.c.b16 %v345, %v344
      %v358 = vpack.c.b16 %v347, %v346
      %v359 = vpack.c.b16 %v349, %v348
      %v360 = vpack.c.b16 %v351, %v350
      %v361 = vpack.c.b16 %v353, %v352
      %370 = vmatprep.subr.bf16.mxu0 0
      %371 = vmatpush1.bf16.msra.mxu0 %v361
      %372 = vmatprep.subr.bf16.mxu0 0
      %373 = vmatpush1.bf16.msra.mxu0 %v360
      %374 = vmatprep.subr.bf16.mxu0 0
      %375 = vmatpush1.bf16.msra.mxu0 %v359
      %376 = vmatprep.subr.bf16.mxu0 0
      %377 = vmatpush1.bf16.msra.mxu0 %v358
      %378 = vmatprep.subr.bf16.mxu0 0
      %379 = vmatpush1.bf16.msra.mxu0 %v357
      %380 = vmatprep.subr.bf16.mxu0 0
      %381 = vmatpush1.bf16.msra.mxu0 %v356
      %382 = vmatprep.subr.bf16.mxu0 0
      %383 = vmatpush1.bf16.msra.mxu0 %v355
      %384 = vmatprep.subr.bf16.mxu0 0
      %385 = vmatpush1.bf16.msra.mxu0 %v354
      %386 = vmatprep.subr.bf16.mxu0 0
      %387 = vmatpush2.bf16.msra.mxu0 0
      %388 = vmatprep.subr.bf16.mxu0 0
      %389 = vmatpush2.bf16.msra.mxu0 0
      %390 = vmatprep.subr.bf16.mxu0 0
      %391 = vmatpush2.bf16.msra.mxu0 0
      %392 = vmatprep.subr.bf16.mxu0 0
      %393 = vmatpush2.bf16.msra.mxu0 0
      %394 = vmatprep.subr.bf16.mxu0 0
      %395 = vmatpush2.bf16.msra.mxu0 0
      %396 = vmatprep.subr.bf16.mxu0 0
      %397 = vmatpush2.bf16.msra.mxu0 0
      %398 = vmatprep.subr.bf16.mxu0 0
      %399 = vmatpush2.bf16.msra.mxu0 0
      %400 = vmatprep.subr.bf16.mxu0 0
      %401 = vmatpush2.bf16.msra.mxu0 0
      %402 = vmatprep.mubr.bf16.mxu0 0
      %403 = vmatmul.mubr.bf16.gmra.mxu0 %v305
      %v404 = vpop.f32.mrf.mxu0
      %v405 = vadd.f32 0.0, %v404
      %v406 = vpop.f32.mrf.mxu0
      %v407 = vpop.f32.mrf.mxu0
      %v408 = vpop.f32.mrf.mxu0
      %409 = vdwg.mxu0
      %v410 = vadd.f32 %v300, %v405
      %v411 = vmul.f32 %v410, %v410
      %412 = vadd.xlane.f32.xlu0 %v411
      %v413 = vpop.xlane.xlu0 %412
      %v414 = vmax.f32 %v413, 1e-24
      %v415 = vrsqrt.pop %v414
      %v416 = vmul.f32 %v410, %v415
      %v417 = vmax.f32 %v416, 0.0
      %418 = vst [vmem:[#allocation9] sm:$0xff] %v417
    $region49: #{tpu_custom_call.1} parent=1 // pred_fallthru
      _
    // Predicated region
    $region50: #{tpu_custom_call.1} parent=1 // pred_check
      _
    $region51: #{tpu_custom_call.1} parent=1 // pred_check_branch
      %420 = sbr.rel (0) target = $region53
    $region52: #{tpu_custom_call.1} parent=1 // pred_region
      %s422 = ssub.s32 128, 128
      %423 = vsyncadd [#allocation5], %s422
      %s425 = sshll.u32 [#allocation9], 4
      %s426 = int_to_ptr.vmem [resolvable:$true] %s425
      %428 = dma.vmem_to_hbm [thread:$0]  %s426, 128, %s7, [#allocation5]
    $region53: #{tpu_custom_call.1} parent=1 // pred_fallthru
      _
    // Predicated region
    $region54: #{tpu_custom_call.1} parent=1 // pred_check
      _
    $region55: #{tpu_custom_call.1} parent=1 // pred_check_branch
      %430 = sbr.rel (0) target = $region57
    $region56: #{tpu_custom_call.1} parent=1 // pred_region
      %431 = dma.done [#allocation5], 128
    $region57: #{tpu_custom_call.1} parent=1 // pred_fallthru
      _
    %432 = vsyncpa [#allocation4], 1
    %433 = vsyncpa [#allocation7], 1
    %434 = vsyncpa [#allocation5], 1

</llo_original>
